<compile_context>
chip_gen: v5e
topology: v5e:2x2
jax: 0.10.0
libtpu: 0.0.40
codegen_flags: <defaults>
</compile_context>

<pallas_src>
import functools

import jax
import jax.numpy as jnp
from jax.experimental import pallas as pl
from jax.experimental.pallas import tpu as pltpu

BN_EPS = 1e-5


def _vmem_limit_bytes():
    """Generation-aware VMEM budget (raise on v5e/v6e, cap on v7x)."""
    try:
        cap = pltpu.get_tpu_info().vmem_capacity_bytes
        return int(min((3 * cap) // 4, 96 * 1024 * 1024))
    except Exception:
        return 48 * 1024 * 1024


def _pick_tile_rows(ho, wo, max_tile_elems):
    """Largest row-tile TH dividing Ho with TH*Wo <= max_tile_elems and TH*Wo a
    multiple of 128 (lane-aligned output blocks).  Falls back to the whole
    image (no spatial tiling) when no such divisor exists."""
    if ho * wo <= max_tile_elems:
        return ho
    for th in range(ho - 1, 1, -1):
        ts = th * wo
        if ho % th == 0 and ts <= max_tile_elems and ts % 128 == 0:
            return th
    return ho


def _fused_kernel(par_ref, w_ref, b_ref, a_ref, out_ref, stats_ref, *,
                  cin, cc, wo, ts):
    """Fused conv3x3/s2/p1 + bias + PReLU + maxpool(2,2) + channel concat,
    plus per-(sample, row-tile) BN statistics.  One grid step = one tile.

    par_ref   : (1, 4, cin, ts+wo) parity planes with (row, col) flattened to
                lanes; lanes [ts, ts+wo) hold the halo row (previous parity
                row; zeros for the first tile -> conv top padding).
    w_ref     : (9, cc, cin)  conv weights, k = kh*3 + kw
    b_ref     : (cc, 1)       conv bias
    a_ref     : (1, 1)        shared PReLU slope
    out_ref   : (1, cin+cc, ts)  [maxpool | PReLU(conv)]  (pre-BN affine)
    stats_ref : (1, cc, 2)    per-tile [sum, sum-of-squares] of PReLU(conv)
    """
    # The four 2x2-parity planes of this tile (plane = row_parity*2 + col_parity).
    ext = [par_ref[0, p, :, :] for p in range(4)]       # (cin, ts+wo) each
    m = [e[:, :ts] for e in ext]                         # aligned taps (i, j)

    # "output column j == 0" mask for the conv's left zero padding.
    j = jax.lax.broadcasted_iota(jnp.int32, (1, ts), 1) % wo
    at_j0 = j == 0
    zcol = jnp.zeros((cin, 1), jnp.float32)

    def up(p):
        # Parity row above (row i-1, col j).  The halo lanes [ts, ts+wo)
        # supply row -1 of this tile, so no masking is required.
        if ts == wo:
            return ext[p][:, ts:]
        return jnp.concatenate([ext[p][:, ts:], ext[p][:, :ts - wo]], axis=-1)

    def left(v):
        # Shift a ts-wide slab one output column right (col j-1), zero col 0.
        s = jnp.concatenate([zcol, v[:, :ts - 1]], axis=-1)
        return jnp.where(at_j0, 0.0, s)

    up2, up3 = up(2), up(3)
    taps = (
        left(up3),   # (kh=0, kw=0): plane 3 @ (i-1, j-1)
        up2,         # (0, 1): plane 2 @ (i-1, j)
        up3,         # (0, 2): plane 3 @ (i-1, j)
        left(m[1]),  # (1, 0): plane 1 @ (i, j-1)
        m[0],        # (1, 1): plane 0 @ (i, j)
        m[1],        # (1, 2): plane 1 @ (i, j)
        left(m[3]),  # (2, 0): plane 3 @ (i, j-1)
        m[2],        # (2, 1): plane 2 @ (i, j)
        m[3],        # (2, 2): plane 3 @ (i, j)
    )

    # conv = nine small (cc, cin) x (cin, ts) MXU matmuls streamed over the
    # whole tile; taps are consumed as values (no im2col scratch traffic).
    y = jnp.zeros((cc, ts), jnp.float32)
    for k in range(9):
        y = y + jnp.dot(w_ref[k], taps[k], preferred_element_type=jnp.float32)
    y = y + b_ref[...]                               # (cc, ts) + (cc, 1)
    y = jnp.where(y >= 0.0, y, a_ref[...] * y)       # PReLU (shared slope)

    # Per-tile BN statistics (folded into one scale/shift outside the kernel).
    stats_ref[0, :, 0:1] = jnp.sum(y, axis=1, keepdims=True)
    stats_ref[0, :, 1:2] = jnp.sum(y * y, axis=1, keepdims=True)

    # maxpool(2,2) = max over the four parity planes already in VMEM.
    pool = jnp.maximum(jnp.maximum(m[0], m[1]), jnp.maximum(m[2], m[3]))

    # Channel concat (pool first, conv branch second) in NCHW-flat layout.
    out_ref[0, :cin, :] = pool
    out_ref[0, cin:, :] = y


def _affine_kernel(x_ref, scale_ref, shift_ref, o_ref):
    """Per-channel y*scale+shift over the full block (pool channels carry
    scale=1, shift=0), so the store is one unmasked full-tile write."""
    o_ref[...] = (x_ref[...] * scale_ref[...][None, :, :]
                  + shift_ref[...][None, :, :])


def initial_block_forward(x, params, *, max_tile_elems=32 * 1024):
    """x: (N, Cin, H, W) float32 NCHW.  Returns (N, Cin+Cc, H//2, W//2)."""
    w = params["conv_w"]         # (Cc, Cin, 3, 3)  torch OIHW
    b = params["conv_b"]         # (Cc,)
    gamma = params["bn_gamma"]   # (Cc,)
    beta = params["bn_beta"]     # (Cc,)
    alpha = params["prelu_a"]    # (1,)  shared PReLU slope

    N, Cin, H, W = x.shape
    assert H % 2 == 0 and W % 2 == 0, "InitialBlock assumes even spatial dims"
    Cc = w.shape[0]
    Cout = Cin + Cc
    Ho, Wo = H // 2, W // 2
    S = Ho * Wo

    TH = _pick_tile_rows(Ho, Wo, max_tile_elems)
    n_tiles = Ho // TH
    TS = TH * Wo
    NT = N * n_tiles

    # ---- parity decomposition (~1x input bytes, one fused gather over x) ----
    # plane = row_parity*2 + col_parity; spatial flattened per row-tile, with a
    # one-parity-row halo appended at the end of each tile's slab.
    xr = x.reshape(N, Cin, n_tiles, TH, 2, Wo, 2)
    planes = xr.transpose(0, 2, 4, 6, 1, 3, 5).reshape(NT, 4, Cin, TH, Wo)
    main = planes.reshape(NT, 4, Cin, TS)
    last_row = planes[:, :, :, TH - 1, :].reshape(N, n_tiles, 4, Cin, Wo)
    halo = jnp.concatenate(
        [jnp.zeros_like(last_row[:, :1]), last_row[:, :-1]], axis=1
    ).reshape(NT, 4, Cin, Wo)
    par = jnp.concatenate([main, halo], axis=-1).astype(jnp.float32)

    # weights as (9, Cc, Cin) with k = kh*3 + kw
    w_k = w.transpose(2, 3, 0, 1).reshape(9, Cc, Cin).astype(jnp.float32)
    b_col = b.reshape(Cc, 1).astype(jnp.float32)
    a_col = alpha.reshape(1, 1).astype(jnp.float32)

    cparams = pltpu.CompilerParams(
        dimension_semantics=("parallel", "parallel"),
        vmem_limit_bytes=_vmem_limit_bytes())

    # ---- pass 1: conv + PReLU + maxpool + concat (pre-BN) + BN statistics ----
    out1, stats = pl.pallas_call(
        functools.partial(_fused_kernel, cin=Cin, cc=Cc, wo=Wo, ts=TS),
        out_shape=(
            jax.ShapeDtypeStruct((N, Cout, S), jnp.float32),
            jax.ShapeDtypeStruct((NT, Cc, 2), jnp.float32),
        ),
        grid=(N, n_tiles),
        in_specs=[
            pl.BlockSpec((1, 4, Cin, TS + Wo),
                         lambda n, t: (n * n_tiles + t, 0, 0, 0)),
            pl.BlockSpec((9, Cc, Cin), lambda n, t: (0, 0, 0)),
            pl.BlockSpec((Cc, 1), lambda n, t: (0, 0)),
            pl.BlockSpec((1, 1), lambda n, t: (0, 0)),
        ],
        out_specs=(
            pl.BlockSpec((1, Cout, TS), lambda n, t: (n, 0, t)),
            pl.BlockSpec((1, Cc, 2), lambda n, t: (n * n_tiles + t, 0, 0)),
        ),
        compiler_params=cparams,
    )(par, w_k, b_col, a_col)

    # ---- fold batch statistics into a per-channel scale/shift (tiny) ----
    # NOTE: var = E[y^2] - E[y]^2 in f32; adequate at typical activation scales
    # (validated to 1e-4 against the two-pass reference below).
    count = jnp.float32(N * Ho * Wo)
    sums = jnp.sum(stats, axis=0)                      # (Cc, 2)
    mean = sums[:, 0] / count
    var = sums[:, 1] / count - mean * mean             # biased (train-mode BN)
    scale = gamma.astype(jnp.float32) * jax.lax.rsqrt(var + BN_EPS)
    shift = beta.astype(jnp.float32) - mean * scale
    # identity affine for the maxpool channels -> pass 2 needs no channel slicing
    scale_full = jnp.concatenate(
        [jnp.ones((Cin,), jnp.float32), scale]).reshape(Cout, 1)
    shift_full = jnp.concatenate(
        [jnp.zeros((Cin,), jnp.float32), shift]).reshape(Cout, 1)

    # ---- pass 2: in-place per-channel affine (aliased; no conv recompute) ----
    io_spec = pl.BlockSpec((1, Cout, TS), lambda n, t: (n, 0, t))
    out_flat = pl.pallas_call(
        _affine_kernel,
        out_shape=jax.ShapeDtypeStruct((N, Cout, S), jnp.float32),
        grid=(N, n_tiles),
        in_specs=[
            io_spec,
            pl.BlockSpec((Cout, 1), lambda n, t: (0, 0)),
            pl.BlockSpec((Cout, 1), lambda n, t: (0, 0)),
        ],
        out_specs=io_spec,
        input_output_aliases={0: 0},
        compiler_params=cparams,
    )(out1, scale_full, shift_full)

    # NCHW output: (N, Cout, S) -> (N, Cout, Ho, Wo) is a free reshape.
    # Note: BN running_mean/var buffers (module state) are not produced; only
    # the forward activation is returned.
    return out_flat.reshape(N, Cout, Ho, Wo)


def _reference_forward(x, params):
    """Pure-JAX reference with identical semantics (for validation)."""
    w, b = params["conv_w"], params["conv_b"]
    gamma, beta, alpha = params["bn_gamma"], params["bn_beta"], params["prelu_a"]
    Cc = w.shape[0]
    conv = jax.lax.conv_general_dilated(
        x, w, window_strides=(2, 2), padding=((1, 1), (1, 1)),
        dimension_numbers=("NCHW", "OIHW", "NCHW"))
    conv = conv + b.reshape(1, Cc, 1, 1)
    pre = jnp.where(conv >= 0.0, conv, alpha[0] * conv)
    mean = jnp.mean(pre, axis=(0, 2, 3), keepdims=True)
    var = jnp.mean((pre - mean) ** 2, axis=(0, 2, 3), keepdims=True)
    bn = (pre - mean) * jax.lax.rsqrt(var + BN_EPS)
    bn = bn * gamma.reshape(1, Cc, 1, 1) + beta.reshape(1, Cc, 1, 1)
    pool = jax.lax.reduce_window(x, -jnp.inf, jax.lax.max,
                                 (1, 1, 2, 2), (1, 1, 2, 2), "VALID")
    return jnp.concatenate([pool, bn], axis=1)


if __name__ == "__main__":
    key = jax.random.PRNGKey(0)

    def make_params(k, cin, cc):
        k1, k2, k3, k4 = jax.random.split(k, 4)
        return {
            "conv_w": 0.1 * jax.random.normal(k1, (cc, cin, 3, 3), jnp.float32),
            "conv_b": 0.1 * jax.random.normal(k2, (cc,), jnp.float32),
            "bn_gamma": 1.0 + 0.1 * jax.random.normal(k3, (cc,), jnp.float32),
            "bn_beta": 0.1 * jax.random.normal(k4, (cc,), jnp.float32),
            "prelu_a": jnp.full((1,), 0.25, jnp.float32),  # nn.PReLU() default
        }

    kp1, kx1, kp2, kx2 = jax.random.split(key, 4)

    # --- test 1: small square input, single spatial tile per sample ---
    N, Cin, H, W, out_channels = 2, 4, 16, 16, 8
    params = make_params(kp1, Cin, out_channels - Cin)
    x = jax.random.normal(kx1, (N, Cin, H, W), jnp.float32)

    out = jax.block_until_ready(jax.jit(initial_block_forward)(x, params))
    assert out.shape == (N, out_channels, H // 2, W // 2), out.shape
    ref = _reference_forward(x, params)
    assert jnp.allclose(out, ref, rtol=1e-4, atol=1e-4), \
        float(jnp.max(jnp.abs(out - ref)))

    # --- test 2: rectangular input, forces the row-tiled (halo) path ---
    N2, Cin2, H2, W2, out_channels2 = 1, 3, 32, 256, 16
    params2 = make_params(kp2, Cin2, out_channels2 - Cin2)
    x2 = jax.random.normal(kx2, (N2, Cin2, H2, W2), jnp.float32)

    fwd_tiled = jax.jit(functools.partial(initial_block_forward,
                                          max_tile_elems=1024))
    out2 = jax.block_until_ready(fwd_tiled(x2, params2))
    assert out2.shape == (N2, out_channels2, H2 // 2, W2 // 2), out2.shape
    ref2 = _reference_forward(x2, params2)
    assert jnp.allclose(out2, ref2, rtol=1e-4, atol=1e-4), \
        float(jnp.max(jnp.abs(out2 - ref2)))

    print("KERNEL_OK")
</pallas_src>

<mosaic_0001>
module attributes {stable_mosaic.version = 11 : i64} {
  func.func @_fused_kernel(%arg0: i32, %arg1: i32, %arg2: memref<1x4x4x72xf32, #tpu.memory_space<vmem>>, %arg3: memref<9x4x4xf32, #tpu.memory_space<vmem>>, %arg4: memref<4x1xf32, #tpu.memory_space<vmem>>, %arg5: memref<1x1xf32, #tpu.memory_space<vmem>>, %arg6: memref<1x8x64xf32, #tpu.memory_space<vmem>>, %arg7: memref<1x4x2xf32, #tpu.memory_space<vmem>>) attributes {dimension_semantics = [#tpu.dimension_semantics<parallel>, #tpu.dimension_semantics<parallel>], iteration_bounds = array<i64: 2, 1>, scalar_prefetch = 0 : i64, scratch_operands = 0 : i64, tpu.core_type = #tpu.core_type<tc>, window_params = [{transform_indices = @transform_0, window_bounds = array<i64: 1, 4, 4, 72>}, {pipeline_mode = #tpu.pipeline_mode<synchronous>, transform_indices = @transform_1, window_bounds = array<i64: 9, 4, 4>}, {pipeline_mode = #tpu.pipeline_mode<synchronous>, transform_indices = @transform_2, window_bounds = array<i64: 4, 1>}, {pipeline_mode = #tpu.pipeline_mode<synchronous>, transform_indices = @transform_3, window_bounds = array<i64: 1, 1>}, {transform_indices = @transform_4, window_bounds = array<i64: 1, 8, 64>}, {transform_indices = @transform_5, window_bounds = array<i64: 1, 4, 2>}]} {
    %c0 = arith.constant 0 : index
    %c0_0 = arith.constant 0 : index
    %c0_1 = arith.constant 0 : index
    %c0_2 = arith.constant 0 : index
    %0 = vector.load %arg2[%c0, %c0_0, %c0_1, %c0_2] : memref<1x4x4x72xf32, #tpu.memory_space<vmem>>, vector<1x1x4x72xf32>
    %1 = vector.shape_cast %0 : vector<1x1x4x72xf32> to vector<4x72xf32>
    %c0_3 = arith.constant 0 : index
    %c1 = arith.constant 1 : index
    %c0_4 = arith.constant 0 : index
    %c0_5 = arith.constant 0 : index
    %2 = vector.load %arg2[%c0_3, %c1, %c0_4, %c0_5] : memref<1x4x4x72xf32, #tpu.memory_space<vmem>>, vector<1x1x4x72xf32>
    %3 = vector.shape_cast %2 : vector<1x1x4x72xf32> to vector<4x72xf32>
    %c0_6 = arith.constant 0 : index
    %c2 = arith.constant 2 : index
    %c0_7 = arith.constant 0 : index
    %c0_8 = arith.constant 0 : index
    %4 = vector.load %arg2[%c0_6, %c2, %c0_7, %c0_8] : memref<1x4x4x72xf32, #tpu.memory_space<vmem>>, vector<1x1x4x72xf32>
    %5 = vector.shape_cast %4 : vector<1x1x4x72xf32> to vector<4x72xf32>
    %c0_9 = arith.constant 0 : index
    %c3 = arith.constant 3 : index
    %c0_10 = arith.constant 0 : index
    %c0_11 = arith.constant 0 : index
    %6 = vector.load %arg2[%c0_9, %c3, %c0_10, %c0_11] : memref<1x4x4x72xf32, #tpu.memory_space<vmem>>, vector<1x1x4x72xf32>
    %7 = vector.shape_cast %6 : vector<1x1x4x72xf32> to vector<4x72xf32>
    %8 = vector.extract_strided_slice %1 {offsets = [0, 0], sizes = [4, 64], strides = [1, 1]} : vector<4x72xf32> to vector<4x64xf32>
    %9 = vector.extract_strided_slice %3 {offsets = [0, 0], sizes = [4, 64], strides = [1, 1]} : vector<4x72xf32> to vector<4x64xf32>
    %10 = vector.extract_strided_slice %5 {offsets = [0, 0], sizes = [4, 64], strides = [1, 1]} : vector<4x72xf32> to vector<4x64xf32>
    %11 = vector.extract_strided_slice %7 {offsets = [0, 0], sizes = [4, 64], strides = [1, 1]} : vector<4x72xf32> to vector<4x64xf32>
    %12 = tpu.iota {dimensions = array<i32: 1>} : vector<1x64xi32>
    %c8_i32 = arith.constant 8 : i32
    %c0_i32 = arith.constant 0 : i32
    %13 = arith.cmpi eq, %c8_i32, %c0_i32 : i32
    %c1_i32 = arith.constant 1 : i32
    %14 = arith.select %13, %c1_i32, %c8_i32 : i32
    %15 = vector.broadcast %14 : i32 to vector<1x64xi32>
    %16 = arith.remsi %12, %15 : vector<1x64xi32>
    %c0_i32_12 = arith.constant 0 : i32
    %17 = vector.broadcast %c0_i32_12 : i32 to vector<1x64xi32>
    %18 = arith.cmpi ne, %16, %17 : vector<1x64xi32>
    %c0_i32_13 = arith.constant 0 : i32
    %19 = vector.broadcast %c0_i32_13 : i32 to vector<1x64xi32>
    %20 = arith.cmpi slt, %16, %19 : vector<1x64xi32>
    %c0_i32_14 = arith.constant 0 : i32
    %21 = arith.cmpi slt, %14, %c0_i32_14 : i32
    %22 = vector.broadcast %21 : i1 to vector<1x64xi1>
    %23 = vector.broadcast %22 : vector<1x64xi1> to vector<1x64xi1>
    %24 = arith.xori %20, %23 : vector<1x64xi1>
    %25 = arith.andi %24, %18 : vector<1x64xi1>
    %26 = vector.broadcast %14 : i32 to vector<1x64xi32>
    %27 = arith.addi %16, %26 : vector<1x64xi32>
    %28 = arith.select %25, %27, %16 : vector<1x64xi1>, vector<1x64xi32>
    %c0_i32_15 = arith.constant 0 : i32
    %29 = vector.broadcast %c0_i32_15 : i32 to vector<1x64xi32>
    %30 = arith.cmpi eq, %28, %29 : vector<1x64xi32>
    %cst = arith.constant 0.000000e+00 : f32
    %31 = vector.broadcast %cst : f32 to vector<4x1xf32>
    %32 = vector.extract_strided_slice %5 {offsets = [0, 64], sizes = [4, 8], strides = [1, 1]} : vector<4x72xf32> to vector<4x8xf32>
    %33 = vector.extract_strided_slice %5 {offsets = [0, 0], sizes = [4, 56], strides = [1, 1]} : vector<4x72xf32> to vector<4x56xf32>
    %34 = tpu.concatenate %32, %33 in 1 : vector<4x8xf32>, vector<4x56xf32> -> vector<4x64xf32>
    %35 = vector.extract_strided_slice %7 {offsets = [0, 64], sizes = [4, 8], strides = [1, 1]} : vector<4x72xf32> to vector<4x8xf32>
    %36 = vector.extract_strided_slice %7 {offsets = [0, 0], sizes = [4, 56], strides = [1, 1]} : vector<4x72xf32> to vector<4x56xf32>
    %37 = tpu.concatenate %35, %36 in 1 : vector<4x8xf32>, vector<4x56xf32> -> vector<4x64xf32>
    %38 = vector.extract_strided_slice %37 {offsets = [0, 0], sizes = [4, 63], strides = [1, 1]} : vector<4x64xf32> to vector<4x63xf32>
    %39 = tpu.concatenate %31, %38 in 1 : vector<4x1xf32>, vector<4x63xf32> -> vector<4x64xf32>
    %cst_16 = arith.constant 0.000000e+00 : f32
    %40 = vector.shape_cast %30 : vector<1x64xi1> to vector<1x64xi1>
    %41 = vector.broadcast %40 : vector<1x64xi1> to vector<4x64xi1>
    %42 = vector.broadcast %cst_16 : f32 to vector<4x64xf32>
    %43 = arith.select %41, %42, %39 : vector<4x64xi1>, vector<4x64xf32>
    %44 = vector.extract_strided_slice %9 {offsets = [0, 0], sizes = [4, 63], strides = [1, 1]} : vector<4x64xf32> to vector<4x63xf32>
    %45 = tpu.concatenate %31, %44 in 1 : vector<4x1xf32>, vector<4x63xf32> -> vector<4x64xf32>
    %cst_17 = arith.constant 0.000000e+00 : f32
    %46 = vector.shape_cast %30 : vector<1x64xi1> to vector<1x64xi1>
    %47 = vector.broadcast %46 : vector<1x64xi1> to vector<4x64xi1>
    %48 = vector.broadcast %cst_17 : f32 to vector<4x64xf32>
    %49 = arith.select %47, %48, %45 : vector<4x64xi1>, vector<4x64xf32>
    %50 = vector.extract_strided_slice %11 {offsets = [0, 0], sizes = [4, 63], strides = [1, 1]} : vector<4x64xf32> to vector<4x63xf32>
    %51 = tpu.concatenate %31, %50 in 1 : vector<4x1xf32>, vector<4x63xf32> -> vector<4x64xf32>
    %cst_18 = arith.constant 0.000000e+00 : f32
    %52 = vector.shape_cast %30 : vector<1x64xi1> to vector<1x64xi1>
    %53 = vector.broadcast %52 : vector<1x64xi1> to vector<4x64xi1>
    %54 = vector.broadcast %cst_18 : f32 to vector<4x64xf32>
    %55 = arith.select %53, %54, %51 : vector<4x64xi1>, vector<4x64xf32>
    %cst_19 = arith.constant 0.000000e+00 : f32
    %56 = vector.broadcast %cst_19 : f32 to vector<4x64xf32>
    %c0_20 = arith.constant 0 : index
    %c0_21 = arith.constant 0 : index
    %c0_22 = arith.constant 0 : index
    %57 = vector.load %arg3[%c0_20, %c0_21, %c0_22] : memref<9x4x4xf32, #tpu.memory_space<vmem>>, vector<1x4x4xf32>
    %58 = vector.shape_cast %57 : vector<1x4x4xf32> to vector<4x4xf32>
    %cst_23 = arith.constant dense<0.000000e+00> : vector<4x64xf32>
    %59 = tpu.matmul %58, %43, %cst_23 {dimension_numbers = #tpu.dot_dimension_numbers<[1], [0], [0], [1], [0, 0, 1, 1], [], []>} : vector<4x4xf32>, vector<4x64xf32>, vector<4x64xf32> -> vector<4x64xf32>
    %60 = arith.addf %56, %59 : vector<4x64xf32>
    %c1_24 = arith.constant 1 : index
    %c0_25 = arith.constant 0 : index
    %c0_26 = arith.constant 0 : index
    %61 = vector.load %arg3[%c1_24, %c0_25, %c0_26] : memref<9x4x4xf32, #tpu.memory_space<vmem>>, vector<1x4x4xf32>
    %62 = vector.shape_cast %61 : vector<1x4x4xf32> to vector<4x4xf32>
    %cst_27 = arith.constant dense<0.000000e+00> : vector<4x64xf32>
    %63 = tpu.matmul %62, %34, %cst_27 {dimension_numbers = #tpu.dot_dimension_numbers<[1], [0], [0], [1], [0, 0, 1, 1], [], []>} : vector<4x4xf32>, vector<4x64xf32>, vector<4x64xf32> -> vector<4x64xf32>
    %64 = arith.addf %60, %63 : vector<4x64xf32>
    %c2_28 = arith.constant 2 : index
    %c0_29 = arith.constant 0 : index
    %c0_30 = arith.constant 0 : index
    %65 = vector.load %arg3[%c2_28, %c0_29, %c0_30] : memref<9x4x4xf32, #tpu.memory_space<vmem>>, vector<1x4x4xf32>
    %66 = vector.shape_cast %65 : vector<1x4x4xf32> to vector<4x4xf32>
    %cst_31 = arith.constant dense<0.000000e+00> : vector<4x64xf32>
    %67 = tpu.matmul %66, %37, %cst_31 {dimension_numbers = #tpu.dot_dimension_numbers<[1], [0], [0], [1], [0, 0, 1, 1], [], []>} : vector<4x4xf32>, vector<4x64xf32>, vector<4x64xf32> -> vector<4x64xf32>
    %68 = arith.addf %64, %67 : vector<4x64xf32>
    %c3_32 = arith.constant 3 : index
    %c0_33 = arith.constant 0 : index
    %c0_34 = arith.constant 0 : index
    %69 = vector.load %arg3[%c3_32, %c0_33, %c0_34] : memref<9x4x4xf32, #tpu.memory_space<vmem>>, vector<1x4x4xf32>
    %70 = vector.shape_cast %69 : vector<1x4x4xf32> to vector<4x4xf32>
    %cst_35 = arith.constant dense<0.000000e+00> : vector<4x64xf32>
    %71 = tpu.matmul %70, %49, %cst_35 {dimension_numbers = #tpu.dot_dimension_numbers<[1], [0], [0], [1], [0, 0, 1, 1], [], []>} : vector<4x4xf32>, vector<4x64xf32>, vector<4x64xf32> -> vector<4x64xf32>
    %72 = arith.addf %68, %71 : vector<4x64xf32>
    %c4 = arith.constant 4 : index
    %c0_36 = arith.constant 0 : index
    %c0_37 = arith.constant 0 : index
    %73 = vector.load %arg3[%c4, %c0_36, %c0_37] : memref<9x4x4xf32, #tpu.memory_space<vmem>>, vector<1x4x4xf32>
    %74 = vector.shape_cast %73 : vector<1x4x4xf32> to vector<4x4xf32>
    %cst_38 = arith.constant dense<0.000000e+00> : vector<4x64xf32>
    %75 = tpu.matmul %74, %8, %cst_38 {dimension_numbers = #tpu.dot_dimension_numbers<[1], [0], [0], [1], [0, 0, 1, 1], [], []>} : vector<4x4xf32>, vector<4x64xf32>, vector<4x64xf32> -> vector<4x64xf32>
    %76 = arith.addf %72, %75 : vector<4x64xf32>
    %c5 = arith.constant 5 : index
    %c0_39 = arith.constant 0 : index
    %c0_40 = arith.constant 0 : index
    %77 = vector.load %arg3[%c5, %c0_39, %c0_40] : memref<9x4x4xf32, #tpu.memory_space<vmem>>, vector<1x4x4xf32>
    %78 = vector.shape_cast %77 : vector<1x4x4xf32> to vector<4x4xf32>
    %cst_41 = arith.constant dense<0.000000e+00> : vector<4x64xf32>
    %79 = tpu.matmul %78, %9, %cst_41 {dimension_numbers = #tpu.dot_dimension_numbers<[1], [0], [0], [1], [0, 0, 1, 1], [], []>} : vector<4x4xf32>, vector<4x64xf32>, vector<4x64xf32> -> vector<4x64xf32>
    %80 = arith.addf %76, %79 : vector<4x64xf32>
    %c6 = arith.constant 6 : index
    %c0_42 = arith.constant 0 : index
    %c0_43 = arith.constant 0 : index
    %81 = vector.load %arg3[%c6, %c0_42, %c0_43] : memref<9x4x4xf32, #tpu.memory_space<vmem>>, vector<1x4x4xf32>
    %82 = vector.shape_cast %81 : vector<1x4x4xf32> to vector<4x4xf32>
    %cst_44 = arith.constant dense<0.000000e+00> : vector<4x64xf32>
    %83 = tpu.matmul %82, %55, %cst_44 {dimension_numbers = #tpu.dot_dimension_numbers<[1], [0], [0], [1], [0, 0, 1, 1], [], []>} : vector<4x4xf32>, vector<4x64xf32>, vector<4x64xf32> -> vector<4x64xf32>
    %84 = arith.addf %80, %83 : vector<4x64xf32>
    %c7 = arith.constant 7 : index
    %c0_45 = arith.constant 0 : index
    %c0_46 = arith.constant 0 : index
    %85 = vector.load %arg3[%c7, %c0_45, %c0_46] : memref<9x4x4xf32, #tpu.memory_space<vmem>>, vector<1x4x4xf32>
    %86 = vector.shape_cast %85 : vector<1x4x4xf32> to vector<4x4xf32>
    %cst_47 = arith.constant dense<0.000000e+00> : vector<4x64xf32>
    %87 = tpu.matmul %86, %10, %cst_47 {dimension_numbers = #tpu.dot_dimension_numbers<[1], [0], [0], [1], [0, 0, 1, 1], [], []>} : vector<4x4xf32>, vector<4x64xf32>, vector<4x64xf32> -> vector<4x64xf32>
    %88 = arith.addf %84, %87 : vector<4x64xf32>
    %c8 = arith.constant 8 : index
    %c0_48 = arith.constant 0 : index
    %c0_49 = arith.constant 0 : index
    %89 = vector.load %arg3[%c8, %c0_48, %c0_49] : memref<9x4x4xf32, #tpu.memory_space<vmem>>, vector<1x4x4xf32>
    %90 = vector.shape_cast %89 : vector<1x4x4xf32> to vector<4x4xf32>
    %cst_50 = arith.constant dense<0.000000e+00> : vector<4x64xf32>
    %91 = tpu.matmul %90, %11, %cst_50 {dimension_numbers = #tpu.dot_dimension_numbers<[1], [0], [0], [1], [0, 0, 1, 1], [], []>} : vector<4x4xf32>, vector<4x64xf32>, vector<4x64xf32> -> vector<4x64xf32>
    %92 = arith.addf %88, %91 : vector<4x64xf32>
    %c0_51 = arith.constant 0 : index
    %c0_52 = arith.constant 0 : index
    %93 = vector.load %arg4[%c0_51, %c0_52] : memref<4x1xf32, #tpu.memory_space<vmem>>, vector<4x1xf32>
    %94 = vector.broadcast %93 : vector<4x1xf32> to vector<4x64xf32>
    %95 = arith.addf %92, %94 : vector<4x64xf32>
    %cst_53 = arith.constant 0.000000e+00 : f32
    %96 = vector.broadcast %cst_53 : f32 to vector<4x64xf32>
    %97 = arith.cmpf oge, %95, %96 : vector<4x64xf32>
    %c0_54 = arith.constant 0 : index
    %c0_55 = arith.constant 0 : index
    %98 = vector.load %arg5[%c0_54, %c0_55] : memref<1x1xf32, #tpu.memory_space<vmem>>, vector<1x1xf32>
    %99 = vector.broadcast %98 : vector<1x1xf32> to vector<4x64xf32>
    %100 = arith.mulf %99, %95 : vector<4x64xf32>
    %101 = arith.select %97, %95, %100 : vector<4x64xi1>, vector<4x64xf32>
    %cst_56 = arith.constant dense<0.000000e+00> : vector<4xf32>
    %102 = vector.multi_reduction <add>, %101, %cst_56 [1] : vector<4x64xf32> to vector<4xf32>
    %103 = vector.shape_cast %102 : vector<4xf32> to vector<4x1xf32>
    %c0_57 = arith.constant 0 : index
    %c0_58 = arith.constant 0 : index
    %c0_59 = arith.constant 0 : index
    %104 = vector.load %arg7[%c0_57, %c0_58, %c0_59] : memref<1x4x2xf32, #tpu.memory_space<vmem>>, vector<1x4x1xf32>
    %105 = vector.shape_cast %104 : vector<1x4x1xf32> to vector<4x1xf32>
    %106 = vector.shape_cast %103 : vector<4x1xf32> to vector<1x4x1xf32>
    tpu.vector_store %arg7[%c0_57, %c0_58, %c0_59], %106 {strides = array<i32>} : memref<1x4x2xf32, #tpu.memory_space<vmem>>, vector<1x4x1xf32>,
    %107 = arith.mulf %101, %101 : vector<4x64xf32>
    %cst_60 = arith.constant dense<0.000000e+00> : vector<4xf32>
    %108 = vector.multi_reduction <add>, %107, %cst_60 [1] : vector<4x64xf32> to vector<4xf32>
    %109 = vector.shape_cast %108 : vector<4xf32> to vector<4x1xf32>
    %c0_61 = arith.constant 0 : index
    %c0_62 = arith.constant 0 : index
    %c1_63 = arith.constant 1 : index
    %110 = vector.load %arg7[%c0_61, %c0_62, %c1_63] : memref<1x4x2xf32, #tpu.memory_space<vmem>>, vector<1x4x1xf32>
    %111 = vector.shape_cast %110 : vector<1x4x1xf32> to vector<4x1xf32>
    %112 = vector.shape_cast %109 : vector<4x1xf32> to vector<1x4x1xf32>
    tpu.vector_store %arg7[%c0_61, %c0_62, %c1_63], %112 {strides = array<i32>} : memref<1x4x2xf32, #tpu.memory_space<vmem>>, vector<1x4x1xf32>,
    %113 = arith.maximumf %8, %9 : vector<4x64xf32>
    %114 = arith.maximumf %10, %11 : vector<4x64xf32>
    %115 = arith.maximumf %113, %114 : vector<4x64xf32>
    %c0_64 = arith.constant 0 : index
    %c0_65 = arith.constant 0 : index
    %c0_66 = arith.constant 0 : index
    %116 = vector.load %arg6[%c0_64, %c0_65, %c0_66] : memref<1x8x64xf32, #tpu.memory_space<vmem>>, vector<1x4x64xf32>
    %117 = vector.shape_cast %116 : vector<1x4x64xf32> to vector<4x64xf32>
    %118 = vector.shape_cast %115 : vector<4x64xf32> to vector<1x4x64xf32>
    tpu.vector_store %arg6[%c0_64, %c0_65, %c0_66], %118 {strides = array<i32>} : memref<1x8x64xf32, #tpu.memory_space<vmem>>, vector<1x4x64xf32>,
    %c0_67 = arith.constant 0 : index
    %c4_68 = arith.constant 4 : index
    %c0_69 = arith.constant 0 : index
    %119 = vector.load %arg6[%c0_67, %c4_68, %c0_69] : memref<1x8x64xf32, #tpu.memory_space<vmem>>, vector<1x4x64xf32>
    %120 = vector.shape_cast %119 : vector<1x4x64xf32> to vector<4x64xf32>
    %121 = vector.shape_cast %101 : vector<4x64xf32> to vector<1x4x64xf32>
    tpu.vector_store %arg6[%c0_67, %c4_68, %c0_69], %121 {strides = array<i32>} : memref<1x8x64xf32, #tpu.memory_space<vmem>>, vector<1x4x64xf32>,
    return
  }
  func.func @transform_0(%arg0: i32, %arg1: i32) -> (i32, i32, i32, i32) {
    %c1_i32 = arith.constant 1 : i32
    %0 = arith.muli %arg0, %c1_i32 : i32
    %1 = arith.addi %0, %arg1 : i32
    %c0_i32 = arith.constant 0 : i32
    %c0_i32_0 = arith.constant 0 : i32
    %c0_i32_1 = arith.constant 0 : i32
    %c0_i32_2 = arith.constant 0 : i32
    return %1, %c0_i32, %c0_i32_0, %c0_i32_1 : i32, i32, i32, i32
  }
  func.func @transform_1(%arg0: i32, %arg1: i32) -> (i32, i32, i32) {
    %c0_i32 = arith.constant 0 : i32
    %c0_i32_0 = arith.constant 0 : i32
    %c0_i32_1 = arith.constant 0 : i32
    %c0_i32_2 = arith.constant 0 : i32
    return %c0_i32, %c0_i32_0, %c0_i32_1 : i32, i32, i32
  }
  func.func @transform_2(%arg0: i32, %arg1: i32) -> (i32, i32) {
    %c0_i32 = arith.constant 0 : i32
    %c0_i32_0 = arith.constant 0 : i32
    %c0_i32_1 = arith.constant 0 : i32
    return %c0_i32, %c0_i32_0 : i32, i32
  }
  func.func @transform_3(%arg0: i32, %arg1: i32) -> (i32, i32) {
    %c0_i32 = arith.constant 0 : i32
    %c0_i32_0 = arith.constant 0 : i32
    %c0_i32_1 = arith.constant 0 : i32
    return %c0_i32, %c0_i32_0 : i32, i32
  }
  func.func @transform_4(%arg0: i32, %arg1: i32) -> (i32, i32, i32) {
    %c0_i32 = arith.constant 0 : i32
    %c0_i32_0 = arith.constant 0 : i32
    return %arg0, %c0_i32, %arg1 : i32, i32, i32
  }
  func.func @transform_5(%arg0: i32, %arg1: i32) -> (i32, i32, i32) {
    %c1_i32 = arith.constant 1 : i32
    %0 = arith.muli %arg0, %c1_i32 : i32
    %1 = arith.addi %0, %arg1 : i32
    %c0_i32 = arith.constant 0 : i32
    %c0_i32_0 = arith.constant 0 : i32
    %c0_i32_1 = arith.constant 0 : i32
    return %1, %c0_i32, %c0_i32_0 : i32, i32, i32
  }
}

module attributes {stable_mosaic.version = 11 : i64} {
  func.func @_affine_kernel(%arg0: i32, %arg1: i32, %arg2: memref<1x8x64xf32, #tpu.memory_space<vmem>>, %arg3: memref<8x1xf32, #tpu.memory_space<vmem>>, %arg4: memref<8x1xf32, #tpu.memory_space<vmem>>, %arg5: memref<1x8x64xf32, #tpu.memory_space<vmem>>) attributes {dimension_semantics = [#tpu.dimension_semantics<parallel>, #tpu.dimension_semantics<parallel>], iteration_bounds = array<i64: 2, 1>, scalar_prefetch = 0 : i64, scratch_operands = 0 : i64, tpu.core_type = #tpu.core_type<tc>, window_params = [{transform_indices = @transform_0, window_bounds = array<i64: 1, 8, 64>}, {pipeline_mode = #tpu.pipeline_mode<synchronous>, transform_indices = @transform_1, window_bounds = array<i64: 8, 1>}, {pipeline_mode = #tpu.pipeline_mode<synchronous>, transform_indices = @transform_2, window_bounds = array<i64: 8, 1>}, {transform_indices = @transform_3, window_bounds = array<i64: 1, 8, 64>}]} {
    %c0 = arith.constant 0 : index
    %c0_0 = arith.constant 0 : index
    %c0_1 = arith.constant 0 : index
    %0 = vector.load %arg2[%c0, %c0_0, %c0_1] : memref<1x8x64xf32, #tpu.memory_space<vmem>>, vector<1x8x64xf32>
    %c0_2 = arith.constant 0 : index
    %c0_3 = arith.constant 0 : index
    %1 = vector.load %arg3[%c0_2, %c0_3] : memref<8x1xf32, #tpu.memory_space<vmem>>, vector<8x1xf32>
    %2 = vector.shape_cast %1 : vector<8x1xf32> to vector<1x8x1xf32>
    %3 = vector.broadcast %2 : vector<1x8x1xf32> to vector<1x8x64xf32>
    %4 = arith.mulf %0, %3 : vector<1x8x64xf32>
    %c0_4 = arith.constant 0 : index
    %c0_5 = arith.constant 0 : index
    %5 = vector.load %arg4[%c0_4, %c0_5] : memref<8x1xf32, #tpu.memory_space<vmem>>, vector<8x1xf32>
    %6 = vector.shape_cast %5 : vector<8x1xf32> to vector<1x8x1xf32>
    %7 = vector.broadcast %6 : vector<1x8x1xf32> to vector<1x8x64xf32>
    %8 = arith.addf %4, %7 : vector<1x8x64xf32>
    %c0_6 = arith.constant 0 : index
    %c0_7 = arith.constant 0 : index
    %c0_8 = arith.constant 0 : index
    %9 = vector.load %arg5[%c0_6, %c0_7, %c0_8] : memref<1x8x64xf32, #tpu.memory_space<vmem>>, vector<1x8x64xf32>
    tpu.vector_store %arg5[%c0_6, %c0_7, %c0_8], %8 {strides = array<i32>} : memref<1x8x64xf32, #tpu.memory_space<vmem>>, vector<1x8x64xf32>,
    return
  }
  func.func @transform_0(%arg0: i32, %arg1: i32) -> (i32, i32, i32) {
    %c0_i32 = arith.constant 0 : i32
    %c0_i32_0 = arith.constant 0 : i32
    return %arg0, %c0_i32, %arg1 : i32, i32, i32
  }
  func.func @transform_1(%arg0: i32, %arg1: i32) -> (i32, i32) {
    %c0_i32 = arith.constant 0 : i32
    %c0_i32_0 = arith.constant 0 : i32
    %c0_i32_1 = arith.constant 0 : i32
    return %c0_i32, %c0_i32_0 : i32, i32
  }
  func.func @transform_2(%arg0: i32, %arg1: i32) -> (i32, i32) {
    %c0_i32 = arith.constant 0 : i32
    %c0_i32_0 = arith.constant 0 : i32
    %c0_i32_1 = arith.constant 0 : i32
    return %c0_i32, %c0_i32_0 : i32, i32
  }
  func.func @transform_3(%arg0: i32, %arg1: i32) -> (i32, i32, i32) {
    %c0_i32 = arith.constant 0 : i32
    %c0_i32_0 = arith.constant 0 : i32
    return %arg0, %c0_i32, %arg1 : i32, i32, i32
  }
}

</mosaic_0001>

<llo_original>
// kernel: initial_block_forward.3
$region0: #{initial_block_forward.3}
  #allocation0 [shape = 'u32[]', space=smem, size = 0x4, offset = 0x4, fixed_abs, tag = 'smem constant byte address 0x4 - core index']
  #allocation1 [shape = 'u32[72,128]{1,0:T(1,128)}', space=vmem, size = 0x9000, scoped, tag = 'internal scratch']
  %s0 = inlined_call_operand.vmem [shape: f32[2,8,64], index: 0, kind: input, shape index: {}, may-alias: {0,3}]
  %s1 = inlined_call_operand.vmem [shape: f32[8,1], index: 1, kind: input, shape index: {}]
  %s2 = inlined_call_operand.vmem [shape: f32[8,1], index: 2, kind: input, shape index: {}]
  %s3 = inlined_call_operand.vmem [shape: f32[2,8,64], index: 3, kind: output, shape index: {}, may-alias: {0,3}]
  %s4 = sld [smem:[#allocation0]]
  $region45: #{initial_block_forward.3} parent=0
    _
  %s6 = ssub.s32 1, %s4
  %s7 = scalar_select 0, %s6, %s4
  loop: start=0, step=1, limit=4
  $region2: #{initial_block_forward.3} parent=0 // loop_pre_header
    _
  $region3: #{initial_block_forward.3} parent=0 // loop_header
    %s9 = sphi 0, %s13
    %p10 = scmp.ge.s32.totalorder %s9, 4
    %s16 = sphi 0, %s28
    %s17 = sphi 0, %s24
    %s18 = sphi 0, %s16
    %s19 = sphi 0, %s17
    %s20 = sphi 0, %s18
    %s21 = sphi 0, %s19
    %s33 = sphi 0, %s35
    %s36 = sphi 0, %s33
    %s37 = sphi 0, %s36
    %s53 = sphi 0, %s37
    %s57 = sphi 0, %s57
    %s59 = sphi 0, %s57
    %s60 = sphi 0, %s59
    %s74 = sphi 0, %s60
    %s78 = sphi 0, %s78
    %s80 = sphi 0, %s78
    %s81 = sphi 0, %s80
    %s95 = sphi 0, %s81
    %s103 = sphi 0, %s105
    %s106 = sphi 0, %s103
    %s107 = sphi 0, %s106
    %s123 = sphi 0, %s107
  $region4: #{initial_block_forward.3} parent=0 // loop_header_branch
    %12 = sbr.rel (%p10) target = $region8
  $region5: #{initial_block_forward.3} parent=0 // loop_body
    %s14 = ssub.s32 %s9, 1
    %s15 = ssub.s32 %s9, 2
    %s22 = sadd.s32 1, %s17
    %p23 = scmp.ge.s32.totalorder %s22, 1
    %s24 = scalar_select %p23, 0, %s22
    %s25 = sadd.s32 1, %s16
    %s26 = scalar_select %p23, %s25, %s16
    %p27 = scmp.ge.s32.totalorder %s26, 2
    %s28 = scalar_select %p27, 0, %s26
    %s29 = ssub.s32 %s16, %s28
    %s30 = ssub.s32 %s17, %s24
    %s31 = sor.u32 %s29, %s30
    %p32 = scmp.eq.s32.totalorder %s31, 0
    %s34 = sadd.s32 %s33, 1
    %s35 = scalar_select %p32, %s33, %s34
    %p38 = pneg %p32
    %p39 = scmp.eq.s32.totalorder %s9, 1
    %p40 = por %p38, %p39
    %p41 = scmp.ne.s32.totalorder %s33, %s36
    %p42 = scmp.eq.s32.totalorder %s9, 0
    %p43 = por %p41, %p42
    %p44 = scmp.ne.s32.totalorder %s33, %s36
    %p45 = scmp.eq.s32.totalorder %s14, 1
    %p46 = por %p44, %p45
    %p47 = scmp.ne.s32.totalorder %s36, %s37
    %p48 = scmp.eq.s32.totalorder %s14, 0
    %p49 = por %p47, %p48
    %p50 = scmp.ne.s32.totalorder %s36, %s37
    %p51 = scmp.eq.s32.totalorder %s15, 1
    %p52 = por %p50, %p51
    %p54 = scmp.ne.s32.totalorder %s37, %s53
    %p55 = scmp.eq.s32.totalorder %s15, 0
    %p56 = por %p54, %p55
    %s58 = sadd.s32 %s57, 1
    %p61 = scmp.eq.s32.totalorder %s9, 1
    %p62 = scmp.ne.s32.totalorder %s57, %s59
    %p63 = scmp.eq.s32.totalorder %s9, 0
    %p64 = por %p62, %p63
    %p65 = scmp.ne.s32.totalorder %s57, %s59
    %p66 = scmp.eq.s32.totalorder %s14, 1
    %p67 = por %p65, %p66
    %p68 = scmp.ne.s32.totalorder %s59, %s60
    %p69 = scmp.eq.s32.totalorder %s14, 0
    %p70 = por %p68, %p69
    %p71 = scmp.ne.s32.totalorder %s59, %s60
    %p72 = scmp.eq.s32.totalorder %s15, 1
    %p73 = por %p71, %p72
    %p75 = scmp.ne.s32.totalorder %s60, %s74
    %p76 = scmp.eq.s32.totalorder %s15, 0
    %p77 = por %p75, %p76
    %s79 = sadd.s32 %s78, 1
    %p82 = scmp.eq.s32.totalorder %s9, 1
    %p83 = scmp.ne.s32.totalorder %s78, %s80
    %p84 = scmp.eq.s32.totalorder %s9, 0
    %p85 = por %p83, %p84
    %p86 = scmp.ne.s32.totalorder %s78, %s80
    %p87 = scmp.eq.s32.totalorder %s14, 1
    %p88 = por %p86, %p87
    %p89 = scmp.ne.s32.totalorder %s80, %s81
    %p90 = scmp.eq.s32.totalorder %s14, 0
    %p91 = por %p89, %p90
    %p92 = scmp.ne.s32.totalorder %s80, %s81
    %p93 = scmp.eq.s32.totalorder %s15, 1
    %p94 = por %p92, %p93
    %p96 = scmp.ne.s32.totalorder %s81, %s95
    %p97 = scmp.eq.s32.totalorder %s15, 0
    %p98 = por %p96, %p97
    %s99 = ssub.s32 %s16, %s28
    %s100 = ssub.s32 %s17, %s24
    %s101 = sor.u32 %s99, %s100
    %p102 = scmp.eq.s32.totalorder %s101, 0
    %s104 = sadd.s32 %s103, 1
    %s105 = scalar_select %p102, %s103, %s104
    %p108 = pneg %p102
    %p109 = scmp.eq.s32.totalorder %s9, 1
    %p110 = por %p108, %p109
    %p111 = scmp.ne.s32.totalorder %s103, %s106
    %p112 = scmp.eq.s32.totalorder %s9, 0
    %p113 = por %p111, %p112
    %p114 = scmp.ne.s32.totalorder %s103, %s106
    %p115 = scmp.eq.s32.totalorder %s14, 1
    %p116 = por %p114, %p115
    %p117 = scmp.ne.s32.totalorder %s106, %s107
    %p118 = scmp.eq.s32.totalorder %s14, 0
    %p119 = por %p117, %p118
    %p120 = scmp.ne.s32.totalorder %s106, %s107
    %p121 = scmp.eq.s32.totalorder %s15, 1
    %p122 = por %p120, %p121
    %p124 = scmp.ne.s32.totalorder %s107, %s123
    %p125 = scmp.eq.s32.totalorder %s15, 0
    %p126 = por %p124, %p125
    %p127 = scmp.le.s32.totalorder 1, %s9
    %p128 = scmp.lt.s32.totalorder %s9, 3
    %p129 = pnand %p127, %p128
    %p130 = pneg %p129
    // Predicated region
    $region9: #{initial_block_forward.3} parent=5 // pred_check
      _
    $region10: #{initial_block_forward.3} parent=5 // pred_check_branch
      %132 = sbr.rel (%p129) target = $region12
    $region11: #{initial_block_forward.3} parent=5 // pred_region
      %s133 = ssub.s32 %s9, 1
      // Predicated region
      $region13: #{initial_block_forward.3} parent=11 // pred_check
        %p134 = pneg %p70
      $region14: #{initial_block_forward.3} parent=11 // pred_check_branch
        %136 = sbr.rel (%p134) target = $region16
      $region15: #{initial_block_forward.3} parent=11 // pred_region
        _
      $region16: #{initial_block_forward.3} parent=11 // pred_fallthru
        _
      // Predicated region
      $region17: #{initial_block_forward.3} parent=11 // pred_check
        %p137 = pneg %p91
      $region18: #{initial_block_forward.3} parent=11 // pred_check_branch
        %139 = sbr.rel (%p137) target = $region20
      $region19: #{initial_block_forward.3} parent=11 // pred_region
        _
      $region20: #{initial_block_forward.3} parent=11 // pred_fallthru
        _
    $region12: #{initial_block_forward.3} parent=5 // pred_fallthru
      _
    %p140 = scmp.lt.s32.totalorder %s9, 2
    // Predicated region
    $region21: #{initial_block_forward.3} parent=5 // pred_check
      %p141 = pneg %p140
    $region22: #{initial_block_forward.3} parent=5 // pred_check_branch
      %143 = sbr.rel (%p141) target = $region24
    $region23: #{initial_block_forward.3} parent=5 // pred_region
      // Predicated region
      $region25: #{initial_block_forward.3} parent=23 // pred_check
        %p144 = pneg %p43
      $region26: #{initial_block_forward.3} parent=23 // pred_check_branch
        %146 = sbr.rel (%p144) target = $region28
      $region27: #{initial_block_forward.3} parent=23 // pred_region
        %p147 = scmp.lt.s32.totalorder %s16, 1
        %s148 = scalar_select %p147, %s16, 1
        %p149 = scmp.lt.s32.totalorder %s17, 0
        %s150 = scalar_select %p149, %s17, 0
        %s151 = sadd.s32 %s150, %s148
        %s152 = smul.addr %s151, 8
        %s153 = scalar_lea.vmem %s0, %s152
      $region28: #{initial_block_forward.3} parent=23 // pred_fallthru
        _
    $region24: #{initial_block_forward.3} parent=5 // pred_fallthru
      _
    %p154 = scmp.le.s32.totalorder 1, %s9
    %p155 = scmp.lt.s32.totalorder %s9, 3
    %p156 = pnand %p154, %p155
    %p157 = pneg %p156
    // Predicated region
    $region29: #{initial_block_forward.3} parent=5 // pred_check
      _
    $region30: #{initial_block_forward.3} parent=5 // pred_check_branch
      %159 = sbr.rel (%p156) target = $region32
    $region31: #{initial_block_forward.3} parent=5 // pred_region
      %s160 = ssub.s32 %s9, 1
      %p161 = scmp.lt.s32.totalorder %s18, 1
      %s162 = scalar_select %p161, %s18, 1
      %p163 = scmp.lt.s32.totalorder %s19, 0
      %s164 = scalar_select %p163, %s19, 0
      %s165 = sadd.s32 %s164, %s162
      %s166 = smul.addr %s165, 8
      %s167 = scalar_lea.vmem %s0, %s166
      %p168 = pneg %p49
      %p169 = pneg %p46
      %p170 = pneg %p70
      %p171 = pneg %p67
      %p172 = pneg %p91
      %p173 = pneg %p88
      %p174 = pneg %p119
      %p175 = pneg %p116
      %p176 = scmp.lt.s32.totalorder %s18, 1
      %s177 = scalar_select %p176, %s18, 1
      %p178 = scmp.lt.s32.totalorder %s19, 0
      %s179 = scalar_select %p178, %s19, 0
      %s180 = sadd.s32 %s179, %s177
      %s181 = smul.addr %s180, 8
      %s182 = scalar_lea.vmem %s3, %s181
      %p183 = scmp.lt.s32.totalorder %s18, 1
      %s184 = scalar_select %p183, %s18, 1
      %p185 = scmp.lt.s32.totalorder %s19, 0
      %s186 = scalar_select %p185, %s19, 0
      %s187 = sadd.s32 %s186, %s184
      %s188 = smul.addr %s187, 8
      %s189 = scalar_lea.vmem %s0, %s188
      %p190 = scmp.lt.s32.totalorder %s18, 1
      %s191 = scalar_select %p190, %s18, 1
      %p192 = scmp.lt.s32.totalorder %s19, 0
      %s193 = scalar_select %p192, %s19, 0
      %s194 = sadd.s32 %s193, %s191
      %s195 = smul.addr %s194, 8
      %s196 = scalar_lea.vmem %s3, %s195
      %v197 = vld [vmem:[%s189] sm:$0xff]
      %v198 = vld [vmem:[%s1] sm:$0xff]
      %200 = vset.pattern.permute.xlu0 0
      %201 = vperm.xlu0 %200, %v198
      %v202 = vpop.permute.xlu0 %201
      %v204 = vmul.f32 %v197, %v202
      %v205 = vld [vmem:[%s2] sm:$0xff]
      %207 = vset.pattern.permute.xlu0 0
      %208 = vperm.xlu0 %207, %v205
      %v209 = vpop.permute.xlu0 %208
      %v211 = vadd.f32 %v204, %v209
      %vm212 = vcmask 523264
      %213 = vst.msk [vmem:[%s196] sm:$0xff] %vm212, %v211
      %p214 = scmp.lt.s32.totalorder %s18, 1
      %s215 = scalar_select %p214, %s18, 1
      %p216 = scmp.lt.s32.totalorder %s19, 0
      %s217 = scalar_select %p216, %s19, 0
      %s218 = sadd.s32 %s217, %s215
      %s219 = smul.addr %s218, 8
      %s220 = scalar_lea.vmem %s3, %s219
      // Predicated region
      $region33: #{initial_block_forward.3} parent=31 // pred_check
        %p221 = pneg %p116
      $region34: #{initial_block_forward.3} parent=31 // pred_check_branch
        %223 = sbr.rel (%p221) target = $region36
      $region35: #{initial_block_forward.3} parent=31 // pred_region
        _
      $region36: #{initial_block_forward.3} parent=31 // pred_fallthru
        _
    $region32: #{initial_block_forward.3} parent=5 // pred_fallthru
      _
    %p224 = scmp.le.s32.totalorder 2, %s9
    // Predicated region
    $region37: #{initial_block_forward.3} parent=5 // pred_check
      %p225 = pneg %p224
    $region38: #{initial_block_forward.3} parent=5 // pred_check_branch
      %227 = sbr.rel (%p225) target = $region40
    $region39: #{initial_block_forward.3} parent=5 // pred_region
      %s228 = ssub.s32 %s9, 2
      // Predicated region
      $region41: #{initial_block_forward.3} parent=39 // pred_check
        %p229 = pneg %p122
      $region42: #{initial_block_forward.3} parent=39 // pred_check_branch
        %231 = sbr.rel (%p229) target = $region44
      $region43: #{initial_block_forward.3} parent=39 // pred_region
        %p232 = scmp.lt.s32.totalorder %s20, 1
        %s233 = scalar_select %p232, %s20, 1
        %p234 = scmp.lt.s32.totalorder %s21, 0
        %s235 = scalar_select %p234, %s21, 0
        %s236 = sadd.s32 %s235, %s233
        %s237 = smul.addr %s236, 8
        %s238 = scalar_lea.vmem %s3, %s237
      $region44: #{initial_block_forward.3} parent=39 // pred_fallthru
        _
    $region40: #{initial_block_forward.3} parent=5 // pred_fallthru
      _
  $region6: #{initial_block_forward.3} parent=0 // loop_footer
    %s13 = sadd.s32 1, %s9
  $region7: #{initial_block_forward.3} parent=0 // loop_footer_branch
    %8 = sbr.rel target = $region3
  $region8: #{initial_block_forward.3} parent=0 // loop_exit
    _

// kernel: initial_block_forward.2
$region0: #{initial_block_forward.2}
  #allocation0 [shape = 'u32[]', space=smem, size = 0x4, offset = 0x4, fixed_abs, tag = 'smem constant byte address 0x4 - core index']
  #allocation1 [shape = 'u32[72,128]{1,0:T(1,128)}', space=vmem, size = 0x9000, scoped, tag = 'internal scratch']
  #allocation2 [shape = 'f32[1,1]{1,0:T(1,128)S(1)}', space=vmem, size = 0x200, scoped, tag = 'scoped memory for initial_block_forward.2']
  %s0 = inlined_call_operand.vmem [shape: f32[2,4,4,72], index: 0, kind: input, shape index: {}]
  %s1 = inlined_call_operand.vmem [shape: f32[9,4,4], index: 1, kind: input, shape index: {}]
  %s2 = inlined_call_operand.vmem [shape: f32[4,1], index: 2, kind: input, shape index: {}]
  %s3 = inlined_call_operand.<no memory space> [shape: f32[1,1], index: 3, kind: input, shape index: {}]
  %s4 = inlined_call_operand.vmem [shape: f32[2,8,64], index: 4, kind: output, shape index: {0}]
  %s5 = inlined_call_operand.vmem [shape: f32[2,4,2], index: 5, kind: output, shape index: {1}]
  %6 = xla_tuple %s4, %s5
  %s7 = sld [smem:[#allocation0]]
  $region57: #{initial_block_forward.2} parent=0
    _
  %s9 = ssub.s32 1, %s7
  %s10 = scalar_select 0, %s9, %s7
  %v11 = vstv %s3
  %12 = vst [vmem:[#allocation2] sm:$0x1] %v11
  loop: start=0, step=1, limit=4
  $region2: #{initial_block_forward.2} parent=0 // loop_pre_header
    _
  $region3: #{initial_block_forward.2} parent=0 // loop_header
    %s14 = sphi 0, %s18
    %p15 = scmp.ge.s32.totalorder %s14, 4
    %s21 = sphi 0, %s33
    %s22 = sphi 0, %s29
    %s23 = sphi 0, %s21
    %s24 = sphi 0, %s22
    %s25 = sphi 0, %s23
    %s26 = sphi 0, %s24
    %s38 = sphi 0, %s40
    %s41 = sphi 0, %s38
    %s42 = sphi 0, %s41
    %s58 = sphi 0, %s42
    %s62 = sphi 0, %s62
    %s64 = sphi 0, %s62
    %s65 = sphi 0, %s64
    %s79 = sphi 0, %s65
    %s83 = sphi 0, %s83
    %s85 = sphi 0, %s83
    %s86 = sphi 0, %s85
    %s100 = sphi 0, %s86
    %s104 = sphi 0, %s104
    %s106 = sphi 0, %s104
    %s107 = sphi 0, %s106
    %s121 = sphi 0, %s107
    %s129 = sphi 0, %s131
    %s132 = sphi 0, %s129
    %s133 = sphi 0, %s132
    %s149 = sphi 0, %s133
    %s157 = sphi 0, %s159
    %s160 = sphi 0, %s157
    %s161 = sphi 0, %s160
    %s177 = sphi 0, %s161
  $region4: #{initial_block_forward.2} parent=0 // loop_header_branch
    %17 = sbr.rel (%p15) target = $region8
  $region5: #{initial_block_forward.2} parent=0 // loop_body
    %s19 = ssub.s32 %s14, 1
    %s20 = ssub.s32 %s14, 2
    %s27 = sadd.s32 1, %s22
    %p28 = scmp.ge.s32.totalorder %s27, 1
    %s29 = scalar_select %p28, 0, %s27
    %s30 = sadd.s32 1, %s21
    %s31 = scalar_select %p28, %s30, %s21
    %p32 = scmp.ge.s32.totalorder %s31, 2
    %s33 = scalar_select %p32, 0, %s31
    %s34 = sadd.s32 %s21, %s22
    %s35 = sadd.s32 %s33, %s29
    %s36 = ssub.s32 %s34, %s35
    %p37 = scmp.eq.s32.totalorder %s36, 0
    %s39 = sadd.s32 %s38, 1
    %s40 = scalar_select %p37, %s38, %s39
    %p43 = pneg %p37
    %p44 = scmp.eq.s32.totalorder %s14, 1
    %p45 = por %p43, %p44
    %p46 = scmp.ne.s32.totalorder %s38, %s41
    %p47 = scmp.eq.s32.totalorder %s14, 0
    %p48 = por %p46, %p47
    %p49 = scmp.ne.s32.totalorder %s38, %s41
    %p50 = scmp.eq.s32.totalorder %s19, 1
    %p51 = por %p49, %p50
    %p52 = scmp.ne.s32.totalorder %s41, %s42
    %p53 = scmp.eq.s32.totalorder %s19, 0
    %p54 = por %p52, %p53
    %p55 = scmp.ne.s32.totalorder %s41, %s42
    %p56 = scmp.eq.s32.totalorder %s20, 1
    %p57 = por %p55, %p56
    %p59 = scmp.ne.s32.totalorder %s42, %s58
    %p60 = scmp.eq.s32.totalorder %s20, 0
    %p61 = por %p59, %p60
    %s63 = sadd.s32 %s62, 1
    %p66 = scmp.eq.s32.totalorder %s14, 1
    %p67 = scmp.ne.s32.totalorder %s62, %s64
    %p68 = scmp.eq.s32.totalorder %s14, 0
    %p69 = por %p67, %p68
    %p70 = scmp.ne.s32.totalorder %s62, %s64
    %p71 = scmp.eq.s32.totalorder %s19, 1
    %p72 = por %p70, %p71
    %p73 = scmp.ne.s32.totalorder %s64, %s65
    %p74 = scmp.eq.s32.totalorder %s19, 0
    %p75 = por %p73, %p74
    %p76 = scmp.ne.s32.totalorder %s64, %s65
    %p77 = scmp.eq.s32.totalorder %s20, 1
    %p78 = por %p76, %p77
    %p80 = scmp.ne.s32.totalorder %s65, %s79
    %p81 = scmp.eq.s32.totalorder %s20, 0
    %p82 = por %p80, %p81
    %s84 = sadd.s32 %s83, 1
    %p87 = scmp.eq.s32.totalorder %s14, 1
    %p88 = scmp.ne.s32.totalorder %s83, %s85
    %p89 = scmp.eq.s32.totalorder %s14, 0
    %p90 = por %p88, %p89
    %p91 = scmp.ne.s32.totalorder %s83, %s85
    %p92 = scmp.eq.s32.totalorder %s19, 1
    %p93 = por %p91, %p92
    %p94 = scmp.ne.s32.totalorder %s85, %s86
    %p95 = scmp.eq.s32.totalorder %s19, 0
    %p96 = por %p94, %p95
    %p97 = scmp.ne.s32.totalorder %s85, %s86
    %p98 = scmp.eq.s32.totalorder %s20, 1
    %p99 = por %p97, %p98
    %p101 = scmp.ne.s32.totalorder %s86, %s100
    %p102 = scmp.eq.s32.totalorder %s20, 0
    %p103 = por %p101, %p102
    %s105 = sadd.s32 %s104, 1
    %p108 = scmp.eq.s32.totalorder %s14, 1
    %p109 = scmp.ne.s32.totalorder %s104, %s106
    %p110 = scmp.eq.s32.totalorder %s14, 0
    %p111 = por %p109, %p110
    %p112 = scmp.ne.s32.totalorder %s104, %s106
    %p113 = scmp.eq.s32.totalorder %s19, 1
    %p114 = por %p112, %p113
    %p115 = scmp.ne.s32.totalorder %s106, %s107
    %p116 = scmp.eq.s32.totalorder %s19, 0
    %p117 = por %p115, %p116
    %p118 = scmp.ne.s32.totalorder %s106, %s107
    %p119 = scmp.eq.s32.totalorder %s20, 1
    %p120 = por %p118, %p119
    %p122 = scmp.ne.s32.totalorder %s107, %s121
    %p123 = scmp.eq.s32.totalorder %s20, 0
    %p124 = por %p122, %p123
    %s125 = ssub.s32 %s21, %s33
    %s126 = ssub.s32 %s22, %s29
    %s127 = sor.u32 %s125, %s126
    %p128 = scmp.eq.s32.totalorder %s127, 0
    %s130 = sadd.s32 %s129, 1
    %s131 = scalar_select %p128, %s129, %s130
    %p134 = pneg %p128
    %p135 = scmp.eq.s32.totalorder %s14, 1
    %p136 = por %p134, %p135
    %p137 = scmp.ne.s32.totalorder %s129, %s132
    %p138 = scmp.eq.s32.totalorder %s14, 0
    %p139 = por %p137, %p138
    %p140 = scmp.ne.s32.totalorder %s129, %s132
    %p141 = scmp.eq.s32.totalorder %s19, 1
    %p142 = por %p140, %p141
    %p143 = scmp.ne.s32.totalorder %s132, %s133
    %p144 = scmp.eq.s32.totalorder %s19, 0
    %p145 = por %p143, %p144
    %p146 = scmp.ne.s32.totalorder %s132, %s133
    %p147 = scmp.eq.s32.totalorder %s20, 1
    %p148 = por %p146, %p147
    %p150 = scmp.ne.s32.totalorder %s133, %s149
    %p151 = scmp.eq.s32.totalorder %s20, 0
    %p152 = por %p150, %p151
    %s153 = sadd.s32 %s21, %s22
    %s154 = sadd.s32 %s33, %s29
    %s155 = ssub.s32 %s153, %s154
    %p156 = scmp.eq.s32.totalorder %s155, 0
    %s158 = sadd.s32 %s157, 1
    %s159 = scalar_select %p156, %s157, %s158
    %p162 = pneg %p156
    %p163 = scmp.eq.s32.totalorder %s14, 1
    %p164 = por %p162, %p163
    %p165 = scmp.ne.s32.totalorder %s157, %s160
    %p166 = scmp.eq.s32.totalorder %s14, 0
    %p167 = por %p165, %p166
    %p168 = scmp.ne.s32.totalorder %s157, %s160
    %p169 = scmp.eq.s32.totalorder %s19, 1
    %p170 = por %p168, %p169
    %p171 = scmp.ne.s32.totalorder %s160, %s161
    %p172 = scmp.eq.s32.totalorder %s19, 0
    %p173 = por %p171, %p172
    %p174 = scmp.ne.s32.totalorder %s160, %s161
    %p175 = scmp.eq.s32.totalorder %s20, 1
    %p176 = por %p174, %p175
    %p178 = scmp.ne.s32.totalorder %s161, %s177
    %p179 = scmp.eq.s32.totalorder %s20, 0
    %p180 = por %p178, %p179
    %p181 = scmp.le.s32.totalorder 1, %s14
    %p182 = scmp.lt.s32.totalorder %s14, 3
    %p183 = pnand %p181, %p182
    %p184 = pneg %p183
    // Predicated region
    $region9: #{initial_block_forward.2} parent=5 // pred_check
      _
    $region10: #{initial_block_forward.2} parent=5 // pred_check_branch
      %186 = sbr.rel (%p183) target = $region12
    $region11: #{initial_block_forward.2} parent=5 // pred_region
      %s187 = ssub.s32 %s14, 1
      // Predicated region
      $region13: #{initial_block_forward.2} parent=11 // pred_check
        %p188 = pneg %p75
      $region14: #{initial_block_forward.2} parent=11 // pred_check_branch
        %190 = sbr.rel (%p188) target = $region16
      $region15: #{initial_block_forward.2} parent=11 // pred_region
        _
      $region16: #{initial_block_forward.2} parent=11 // pred_fallthru
        _
      // Predicated region
      $region17: #{initial_block_forward.2} parent=11 // pred_check
        %p191 = pneg %p96
      $region18: #{initial_block_forward.2} parent=11 // pred_check_branch
        %193 = sbr.rel (%p191) target = $region20
      $region19: #{initial_block_forward.2} parent=11 // pred_region
        _
      $region20: #{initial_block_forward.2} parent=11 // pred_fallthru
        _
      // Predicated region
      $region21: #{initial_block_forward.2} parent=11 // pred_check
        %p194 = pneg %p117
      $region22: #{initial_block_forward.2} parent=11 // pred_check_branch
        %196 = sbr.rel (%p194) target = $region24
      $region23: #{initial_block_forward.2} parent=11 // pred_region
        _
      $region24: #{initial_block_forward.2} parent=11 // pred_fallthru
        _
    $region12: #{initial_block_forward.2} parent=5 // pred_fallthru
      _
    %p197 = scmp.lt.s32.totalorder %s14, 2
    // Predicated region
    $region25: #{initial_block_forward.2} parent=5 // pred_check
      %p198 = pneg %p197
    $region26: #{initial_block_forward.2} parent=5 // pred_check_branch
      %200 = sbr.rel (%p198) target = $region28
    $region27: #{initial_block_forward.2} parent=5 // pred_region
      // Predicated region
      $region29: #{initial_block_forward.2} parent=27 // pred_check
        %p201 = pneg %p48
      $region30: #{initial_block_forward.2} parent=27 // pred_check_branch
        %203 = sbr.rel (%p201) target = $region32
      $region31: #{initial_block_forward.2} parent=27 // pred_region
        %s204 = sadd.s32 %s21, %s22
        %p205 = scmp.lt.s32.totalorder %s204, 1
        %s206 = scalar_select %p205, %s204, 1
        %s207 = smul.addr %s206, 4
        %s208 = smul.addr %s207, 4
        %s209 = scalar_lea.vmem %s0, %s208
        %s210 = sadd.s32 %s21, %s22
      $region32: #{initial_block_forward.2} parent=27 // pred_fallthru
        _
    $region28: #{initial_block_forward.2} parent=5 // pred_fallthru
      _
    %p211 = scmp.le.s32.totalorder 1, %s14
    %p212 = scmp.lt.s32.totalorder %s14, 3
    %p213 = pnand %p211, %p212
    %p214 = pneg %p213
    // Predicated region
    $region33: #{initial_block_forward.2} parent=5 // pred_check
      _
    $region34: #{initial_block_forward.2} parent=5 // pred_check_branch
      %216 = sbr.rel (%p213) target = $region36
    $region35: #{initial_block_forward.2} parent=5 // pred_region
      %s217 = ssub.s32 %s14, 1
      %s218 = sadd.s32 %s23, %s24
      %p219 = scmp.lt.s32.totalorder %s218, 1
      %s220 = scalar_select %p219, %s218, 1
      %s221 = smul.addr %s220, 4
      %s222 = smul.addr %s221, 4
      %s223 = scalar_lea.vmem %s0, %s222
      %p224 = pneg %p54
      %p225 = pneg %p51
      %p226 = pneg %p75
      %p227 = pneg %p72
      %p228 = pneg %p96
      %p229 = pneg %p93
      %p230 = pneg %p117
      %p231 = pneg %p114
      %p232 = pneg %p145
      %p233 = pneg %p142
      %p234 = scmp.lt.s32.totalorder %s23, 1
      %s235 = scalar_select %p234, %s23, 1
      %p236 = scmp.lt.s32.totalorder %s24, 0
      %s237 = scalar_select %p236, %s24, 0
      %s238 = sadd.s32 %s237, %s235
      %s239 = smul.addr %s238, 8
      %s240 = scalar_lea.vmem %s4, %s239
      %p241 = pneg %p173
      %p242 = pneg %p170
      %s243 = sadd.s32 %s23, %s24
      %p244 = scmp.lt.s32.totalorder %s243, 1
      %s245 = scalar_select %p244, %s243, 1
      %s246 = smul.addr %s245, 4
      %s247 = scalar_lea.vmem %s5, %s246
      %s248 = sadd.s32 %s23, %s24
      %p249 = scmp.lt.s32.totalorder %s248, 1
      %s250 = scalar_select %p249, %s248, 1
      %s251 = smul.addr %s250, 4
      %s252 = smul.addr %s251, 4
      %s253 = scalar_lea.vmem %s0, %s252
      %s254 = sadd.s32 %s23, %s24
      %p255 = scmp.lt.s32.totalorder %s23, 1
      %s256 = scalar_select %p255, %s23, 1
      %p257 = scmp.lt.s32.totalorder %s24, 0
      %s258 = scalar_select %p257, %s24, 0
      %s259 = sadd.s32 %s258, %s256
      %s260 = smul.addr %s259, 8
      %s261 = scalar_lea.vmem %s4, %s260
      %s262 = sadd.s32 %s23, %s24
      %p263 = scmp.lt.s32.totalorder %s262, 1
      %s264 = scalar_select %p263, %s262, 1
      %s265 = smul.addr %s264, 4
      %s266 = scalar_lea.vmem %s5, %s265
      %s267 = sadd.s32 %s23, %s24
      %v268 = vld [vmem:[%s253] sm:$0xf]
      %s269 = scalar_lea.vmem %s253, 4
      %v270 = vld [vmem:[%s269] sm:$0xf]
      %s271 = scalar_lea.vmem %s253, 8
      %v272 = vld [vmem:[%s271] sm:$0xf]
      %s273 = scalar_lea.vmem %s253, 12
      %v274 = vld [vmem:[%s273] sm:$0xf]
      %v275 = vlaneseq
      %v276 = vand.u32 %v275, 127
      %vm277 = vcmp.lt.s32.totalorder %v276, 0
      %v278 = vsub.s32 0, %v276
      %v279 = vsel %vm277, %v278, %v276
      %v280 = vshrl.u32 %v279, 3
      %v281 = vand.u32 %v279, 7
      %v282 = vsub.s32 0, %v281
      %v283 = vsel %vm277, %v282, %v281
      %vm284 = vcmp.ne.s32.totalorder %v283, 0
      %vm285 = vcmp.lt.s32.totalorder %v283, 0
      %vm286 = vmand %vm285, %vm284
      %v287 = vadd.s32 %v283, 8
      %v288 = vsel %vm286, %v287, %v283
      %vm289 = vcmp.eq.s32.totalorder %v288, 0
      %291 = vrot.lane.b32.xlu0 %v272, 64
      %v292 = vpop.permute.xlu0 %291
      %294 = vrot.lane.b32.xlu0 %v272, 8
      %v295 = vpop.permute.xlu0 %294
      %vm297 = vcmask 64512
      %v298 = vsel %vm297, %v292, %v295
      %300 = vrot.lane.b32.xlu0 %v274, 64
      %v301 = vpop.permute.xlu0 %300
      %303 = vrot.lane.b32.xlu0 %v274, 8
      %v304 = vpop.permute.xlu0 %303
      %v306 = vsel %vm297, %v301, %v304
      %308 = vrot.lane.b32.xlu0 %v306, 1
      %v309 = vpop.permute.xlu0 %308
      %vm311 = vcmask 7168
      %v312 = vsel %vm311, 0.0, %v309
      %v313 = vsel %vm289, 1, 0
      %vm314 = vcmp.eq.s32.totalorder %v313, 1
      %v315 = vsel %vm314, 0.0, %v312
      %317 = vrot.lane.b32.xlu0 %v270, 1
      %v318 = vpop.permute.xlu0 %317
      %v320 = vsel %vm311, 0.0, %v318
      %v321 = vsel %vm314, 0.0, %v320
      %322 = vrot.lane.b32.xlu0 %v274, 1
      %v323 = vpop.permute.xlu0 %322
      %v325 = vsel %vm311, 0.0, %v323
      %v326 = vsel %vm314, 0.0, %v325
      %v327 = vld [vmem:[%s1] sm:$0xf]
      %s328 = scalar_lea.vmem %s1, 4
      %v329 = vld [vmem:[%s328] sm:$0xf]
      %vm330 = vcmask 31744
      %v332 = vsel %vm330, %v329, 0
      %vm334 = vcmask 1043456
      %v336 = vsel %vm334, %v298, 0
      %338 = vmatpush.msra.mxu0 0.0
      %339 = vmatpush.msra.mxu0 0.0
      %340 = vmatpush.msra.mxu0 0.0
      %341 = vmatpush.msra.mxu0 0.0
      %342 = vmatpush.msra.mxu0 0.0
      %343 = vmatpush.msra.mxu0 0.0
      %344 = vmatpush.msra.mxu0 0.0
      %345 = vmatpush.msra.mxu0 0.0
      %346 = vmatpush.msra.mxu0 0.0
      %347 = vmatpush.msra.mxu0 0.0
      %348 = vmatpush.msra.mxu0 0.0
      %349 = vmatpush.msra.mxu0 0.0
      %350 = vmatpush.msra.mxu0 0.0
      %351 = vmatpush.msra.mxu0 0.0
      %352 = vmatpush.msra.mxu0 0.0
      %353 = vmatpush.msra.mxu0 %v336
      %354 = vmatmul.f32.gmra.mxu0 %v332
      %v355 = vpop.f32.mrf.mxu0
      %v356 = vadd.f32 0.0, %v355
      %357 = vdwg.mxu0
      %v359 = vsel %vm330, %v327, 0
      %v362 = vsel %vm334, %v315, 0
      %364 = vmatpush.msra.mxu0 0.0
      %365 = vmatpush.msra.mxu0 0.0
      %366 = vmatpush.msra.mxu0 0.0
      %367 = vmatpush.msra.mxu0 0.0
      %368 = vmatpush.msra.mxu0 0.0
      %369 = vmatpush.msra.mxu0 0.0
      %370 = vmatpush.msra.mxu0 0.0
      %371 = vmatpush.msra.mxu0 0.0
      %372 = vmatpush.msra.mxu0 0.0
      %373 = vmatpush.msra.mxu0 0.0
      %374 = vmatpush.msra.mxu0 0.0
      %375 = vmatpush.msra.mxu0 0.0
      %376 = vmatpush.msra.mxu0 0.0
      %377 = vmatpush.msra.mxu0 0.0
      %378 = vmatpush.msra.mxu0 0.0
      %379 = vmatpush.msra.mxu0 %v362
      %380 = vmatmul.f32.gmra.mxu0 %v359
      %v381 = vpop.f32.mrf.mxu0
      %v382 = vadd.f32 %v356, %v381
      %383 = vdwg.mxu0
      %s384 = scalar_lea.vmem %s1, 8
      %v385 = vld [vmem:[%s384] sm:$0xf]
      %v387 = vsel %vm330, %v385, 0
      %v389 = vsel %vm334, %v306, 0
      %391 = vmatpush.msra.mxu0 0.0
      %392 = vmatpush.msra.mxu0 0.0
      %393 = vmatpush.msra.mxu0 0.0
      %394 = vmatpush.msra.mxu0 0.0
      %395 = vmatpush.msra.mxu0 0.0
      %396 = vmatpush.msra.mxu0 0.0
      %397 = vmatpush.msra.mxu0 0.0
      %398 = vmatpush.msra.mxu0 0.0
      %399 = vmatpush.msra.mxu0 0.0
      %400 = vmatpush.msra.mxu0 0.0
      %401 = vmatpush.msra.mxu0 0.0
      %402 = vmatpush.msra.mxu0 0.0
      %403 = vmatpush.msra.mxu0 0.0
      %404 = vmatpush.msra.mxu0 0.0
      %405 = vmatpush.msra.mxu0 0.0
      %406 = vmatpush.msra.mxu0 %v389
      %407 = vmatmul.f32.gmra.mxu0 %v387
      %v408 = vpop.f32.mrf.mxu0
      %v409 = vadd.f32 0.0, %v408
      %410 = vdwg.mxu0
      %v411 = vadd.f32 %v382, %v409
      %s412 = scalar_lea.vmem %s1, 12
      %v413 = vld [vmem:[%s412] sm:$0xf]
      %v415 = vsel %vm330, %v413, 0
      %v418 = vsel %vm334, %v321, 0
      %420 = vmatpush.msra.mxu0 0.0
      %421 = vmatpush.msra.mxu0 0.0
      %422 = vmatpush.msra.mxu0 0.0
      %423 = vmatpush.msra.mxu0 0.0
      %424 = vmatpush.msra.mxu0 0.0
      %425 = vmatpush.msra.mxu0 0.0
      %426 = vmatpush.msra.mxu0 0.0
      %427 = vmatpush.msra.mxu0 0.0
      %428 = vmatpush.msra.mxu0 0.0
      %429 = vmatpush.msra.mxu0 0.0
      %430 = vmatpush.msra.mxu0 0.0
      %431 = vmatpush.msra.mxu0 0.0
      %432 = vmatpush.msra.mxu0 0.0
      %433 = vmatpush.msra.mxu0 0.0
      %434 = vmatpush.msra.mxu0 0.0
      %435 = vmatpush.msra.mxu0 %v418
      %436 = vmatmul.f32.gmra.mxu0 %v415
      %v437 = vpop.f32.mrf.mxu0
      %v438 = vadd.f32 0.0, %v437
      %439 = vdwg.mxu0
      %v440 = vadd.f32 %v411, %v438
      %s441 = scalar_lea.vmem %s1, 16
      %v442 = vld [vmem:[%s441] sm:$0xf]
      %v444 = vsel %vm330, %v442, 0
      %v447 = vsel %vm334, %v268, 0
      %449 = vmatpush.msra.mxu0 0.0
      %450 = vmatpush.msra.mxu0 0.0
      %451 = vmatpush.msra.mxu0 0.0
      %452 = vmatpush.msra.mxu0 0.0
      %453 = vmatpush.msra.mxu0 0.0
      %454 = vmatpush.msra.mxu0 0.0
      %455 = vmatpush.msra.mxu0 0.0
      %456 = vmatpush.msra.mxu0 0.0
      %457 = vmatpush.msra.mxu0 0.0
      %458 = vmatpush.msra.mxu0 0.0
      %459 = vmatpush.msra.mxu0 0.0
      %460 = vmatpush.msra.mxu0 0.0
      %461 = vmatpush.msra.mxu0 0.0
      %462 = vmatpush.msra.mxu0 0.0
      %463 = vmatpush.msra.mxu0 0.0
      %464 = vmatpush.msra.mxu0 %v447
      %465 = vmatmul.f32.gmra.mxu0 %v444
      %v466 = vpop.f32.mrf.mxu0
      %v467 = vadd.f32 0.0, %v466
      %468 = vdwg.mxu0
      %v469 = vadd.f32 %v440, %v467
      %s470 = scalar_lea.vmem %s1, 20
      %v471 = vld [vmem:[%s470] sm:$0xf]
      %v473 = vsel %vm330, %v471, 0
      %v475 = vsel %vm334, %v270, 0
      %477 = vmatpush.msra.mxu0 0.0
      %478 = vmatpush.msra.mxu0 0.0
      %479 = vmatpush.msra.mxu0 0.0
      %480 = vmatpush.msra.mxu0 0.0
      %481 = vmatpush.msra.mxu0 0.0
      %482 = vmatpush.msra.mxu0 0.0
      %483 = vmatpush.msra.mxu0 0.0
      %484 = vmatpush.msra.mxu0 0.0
      %485 = vmatpush.msra.mxu0 0.0
      %486 = vmatpush.msra.mxu0 0.0
      %487 = vmatpush.msra.mxu0 0.0
      %488 = vmatpush.msra.mxu0 0.0
      %489 = vmatpush.msra.mxu0 0.0
      %490 = vmatpush.msra.mxu0 0.0
      %491 = vmatpush.msra.mxu0 0.0
      %492 = vmatpush.msra.mxu0 %v475
      %493 = vmatmul.f32.gmra.mxu0 %v473
      %v494 = vpop.f32.mrf.mxu0
      %v495 = vadd.f32 0.0, %v494
      %496 = vdwg.mxu0
      %v497 = vadd.f32 %v469, %v495
      %s498 = scalar_lea.vmem %s1, 24
      %v499 = vld [vmem:[%s498] sm:$0xf]
      %v501 = vsel %vm330, %v499, 0
      %v504 = vsel %vm334, %v326, 0
      %506 = vmatpush.msra.mxu0 0.0
      %507 = vmatpush.msra.mxu0 0.0
      %508 = vmatpush.msra.mxu0 0.0
      %509 = vmatpush.msra.mxu0 0.0
      %510 = vmatpush.msra.mxu0 0.0
      %511 = vmatpush.msra.mxu0 0.0
      %512 = vmatpush.msra.mxu0 0.0
      %513 = vmatpush.msra.mxu0 0.0
      %514 = vmatpush.msra.mxu0 0.0
      %515 = vmatpush.msra.mxu0 0.0
      %516 = vmatpush.msra.mxu0 0.0
      %517 = vmatpush.msra.mxu0 0.0
      %518 = vmatpush.msra.mxu0 0.0
      %519 = vmatpush.msra.mxu0 0.0
      %520 = vmatpush.msra.mxu0 0.0
      %521 = vmatpush.msra.mxu0 %v504
      %522 = vmatmul.f32.gmra.mxu0 %v501
      %v523 = vpop.f32.mrf.mxu0
      %v524 = vadd.f32 0.0, %v523
      %525 = vdwg.mxu0
      %v526 = vadd.f32 %v497, %v524
      %s527 = scalar_lea.vmem %s1, 28
      %v528 = vld [vmem:[%s527] sm:$0xf]
      %v530 = vsel %vm330, %v528, 0
      %v532 = vsel %vm334, %v272, 0
      %534 = vmatpush.msra.mxu0 0.0
      %535 = vmatpush.msra.mxu0 0.0
      %536 = vmatpush.msra.mxu0 0.0
      %537 = vmatpush.msra.mxu0 0.0
      %538 = vmatpush.msra.mxu0 0.0
      %539 = vmatpush.msra.mxu0 0.0
      %540 = vmatpush.msra.mxu0 0.0
      %541 = vmatpush.msra.mxu0 0.0
      %542 = vmatpush.msra.mxu0 0.0
      %543 = vmatpush.msra.mxu0 0.0
      %544 = vmatpush.msra.mxu0 0.0
      %545 = vmatpush.msra.mxu0 0.0
      %546 = vmatpush.msra.mxu0 0.0
      %547 = vmatpush.msra.mxu0 0.0
      %548 = vmatpush.msra.mxu0 0.0
      %549 = vmatpush.msra.mxu0 %v532
      %550 = vmatmul.f32.gmra.mxu0 %v530
      %v551 = vpop.f32.mrf.mxu0
      %v552 = vadd.f32 0.0, %v551
      %553 = vdwg.mxu0
      %v554 = vadd.f32 %v526, %v552
      %s555 = scalar_lea.vmem %s1, 32
      %v556 = vld [vmem:[%s555] sm:$0xf]
      %v558 = vsel %vm330, %v556, 0
      %v560 = vsel %vm334, %v274, 0
      %562 = vmatpush.msra.mxu0 0.0
      %563 = vmatpush.msra.mxu0 0.0
      %564 = vmatpush.msra.mxu0 0.0
      %565 = vmatpush.msra.mxu0 0.0
      %566 = vmatpush.msra.mxu0 0.0
      %567 = vmatpush.msra.mxu0 0.0
      %568 = vmatpush.msra.mxu0 0.0
      %569 = vmatpush.msra.mxu0 0.0
      %570 = vmatpush.msra.mxu0 0.0
      %571 = vmatpush.msra.mxu0 0.0
      %572 = vmatpush.msra.mxu0 0.0
      %573 = vmatpush.msra.mxu0 0.0
      %574 = vmatpush.msra.mxu0 0.0
      %575 = vmatpush.msra.mxu0 0.0
      %576 = vmatpush.msra.mxu0 0.0
      %577 = vmatpush.msra.mxu0 %v560
      %578 = vmatmul.f32.gmra.mxu0 %v558
      %v579 = vpop.f32.mrf.mxu0
      %v580 = vadd.f32 0.0, %v579
      %581 = vdwg.mxu0
      %v582 = vadd.f32 %v554, %v580
      %v583 = vld [vmem:[%s2] sm:$0xf]
      %585 = vset.pattern.permute.xlu0 0
      %586 = vperm.xlu0 %585, %v583
      %v587 = vpop.permute.xlu0 %586
      %v589 = vadd.f32 %v582, %v587
      %vm590 = vcmp.ge.f32.partialorder %v589, 0.0
      %v591 = vld [vmem:[#allocation2] sm:$0x1]
      %v593 = vperm.slane %v591, 0
      %594 = vset.pattern.permute.xlu0 0
      %595 = vperm.xlu0 %594, %v593
      %v596 = vpop.permute.xlu0 %595
      %v598 = vmul.f32 %v596, %v589
      %v599 = vsel %vm590, %v589, %v598
      %vm600 = vcmask 519168
      %v601 = vsel %vm600, %v599, 0.0
      %602 = vadd.xlane.f32.xlu0 %v601
      %v603 = vpop.xlane.xlu0 %602
      %vm604 = vcmask 3072
      %605 = vst.msk [vmem:[%s266] sm:$0xf] %vm604, %v603
      %v606 = vmul.f32 %v599, %v599
      %v607 = vsel %vm600, %v606, 0.0
      %608 = vadd.xlane.f32.xlu0 %v607
      %v609 = vpop.xlane.xlu0 %608
      %vm610 = vcmask 11272
      %611 = vst.msk [vmem:[%s266] sm:$0xf] %vm610, %v609
      %v612 = vmax.f32 %v268, %v270
      %v613 = vmax.f32 %v272, %v274
      %v614 = vmax.f32 %v612, %v613
      %615 = vst.msk [vmem:[%s261] sm:$0xf] %vm600, %v614
      %616 = vst.msk [vmem:[%s261 + $0x4] sm:$0xf] %vm600, %v599
      %p617 = scmp.lt.s32.totalorder %s23, 1
      %s618 = scalar_select %p617, %s23, 1
      %p619 = scmp.lt.s32.totalorder %s24, 0
      %s620 = scalar_select %p619, %s24, 0
      %s621 = sadd.s32 %s620, %s618
      %s622 = smul.addr %s621, 8
      %s623 = scalar_lea.vmem %s4, %s622
      %s624 = sadd.s32 %s23, %s24
      %p625 = scmp.lt.s32.totalorder %s624, 1
      %s626 = scalar_select %p625, %s624, 1
      %s627 = smul.addr %s626, 4
      %s628 = scalar_lea.vmem %s5, %s627
      // Predicated region
      $region37: #{initial_block_forward.2} parent=35 // pred_check
        %p629 = pneg %p142
      $region38: #{initial_block_forward.2} parent=35 // pred_check_branch
        %631 = sbr.rel (%p629) target = $region40
      $region39: #{initial_block_forward.2} parent=35 // pred_region
        _
      $region40: #{initial_block_forward.2} parent=35 // pred_fallthru
        _
      // Predicated region
      $region41: #{initial_block_forward.2} parent=35 // pred_check
        %p632 = pneg %p170
      $region42: #{initial_block_forward.2} parent=35 // pred_check_branch
        %634 = sbr.rel (%p632) target = $region44
      $region43: #{initial_block_forward.2} parent=35 // pred_region
        %s635 = sadd.s32 %s23, %s24
      $region44: #{initial_block_forward.2} parent=35 // pred_fallthru
        _
    $region36: #{initial_block_forward.2} parent=5 // pred_fallthru
      _
    %p636 = scmp.le.s32.totalorder 2, %s14
    // Predicated region
    $region45: #{initial_block_forward.2} parent=5 // pred_check
      %p637 = pneg %p636
    $region46: #{initial_block_forward.2} parent=5 // pred_check_branch
      %639 = sbr.rel (%p637) target = $region48
    $region47: #{initial_block_forward.2} parent=5 // pred_region
      %s640 = ssub.s32 %s14, 2
      // Predicated region
      $region49: #{initial_block_forward.2} parent=47 // pred_check
        %p641 = pneg %p148
      $region50: #{initial_block_forward.2} parent=47 // pred_check_branch
        %643 = sbr.rel (%p641) target = $region52
      $region51: #{initial_block_forward.2} parent=47 // pred_region
        %p644 = scmp.lt.s32.totalorder %s25, 1
        %s645 = scalar_select %p644, %s25, 1
        %p646 = scmp.lt.s32.totalorder %s26, 0
        %s647 = scalar_select %p646, %s26, 0
        %s648 = sadd.s32 %s647, %s645
        %s649 = smul.addr %s648, 8
        %s650 = scalar_lea.vmem %s4, %s649
      $region52: #{initial_block_forward.2} parent=47 // pred_fallthru
        _
      // Predicated region
      $region53: #{initial_block_forward.2} parent=47 // pred_check
        %p651 = pneg %p176
      $region54: #{initial_block_forward.2} parent=47 // pred_check_branch
        %653 = sbr.rel (%p651) target = $region56
      $region55: #{initial_block_forward.2} parent=47 // pred_region
        %s654 = sadd.s32 %s25, %s26
        %p655 = scmp.lt.s32.totalorder %s654, 1
        %s656 = scalar_select %p655, %s654, 1
        %s657 = smul.addr %s656, 4
        %s658 = scalar_lea.vmem %s5, %s657
      $region56: #{initial_block_forward.2} parent=47 // pred_fallthru
        _
    $region48: #{initial_block_forward.2} parent=5 // pred_fallthru
      _
  $region6: #{initial_block_forward.2} parent=0 // loop_footer
    %s18 = sadd.s32 1, %s14
  $region7: #{initial_block_forward.2} parent=0 // loop_footer_branch
    %13 = sbr.rel target = $region3
  $region8: #{initial_block_forward.2} parent=0 // loop_exit
    _

</llo_original>
